<compile_context>
chip_gen: v5e
topology: v5e:2x2
jax: 0.10.0
libtpu: 0.0.40
codegen_flags: <defaults>
</compile_context>

<pallas_src>
import numpy as np
import jax
import jax.numpy as jnp
from jax.experimental import pallas as pl
from jax.experimental.pallas import tpu as pltpu


def _bilinear_matrix(out_size: int, in_size: int) -> np.ndarray:
    """Interpolation matrix M (out_size, in_size): y = M @ x reproduces PyTorch
    bilinear resize (align_corners=False) along one axis."""
    M = np.zeros((out_size, in_size), dtype=np.float32)
    if in_size == 1:
        M[:, 0] = 1.0
        return M
    scale = in_size / out_size
    for i in range(out_size):
        src = (i + 0.5) * scale - 0.5
        src = max(src, 0.0)                      # PyTorch clamps negative source idx
        i0 = min(int(np.floor(src)), in_size - 1)
        i1 = min(i0 + 1, in_size - 1)
        w1 = src - i0
        w0 = 1.0 - w1
        M[i, i0] += w0
        M[i, i1] += w1
    return M


def _pick_row_block(H: int, C: int, W: int, itemsize: int) -> int:
    """Input-row block size: largest multiple-of-8 divisor of H whose
    double-buffered (C, hb, W) window stays under ~8 MiB, preferring >=4 grid
    steps so the HBM->VMEM DMA overlaps compute."""
    bytes_per_row = max(1, 2 * C * W * itemsize)          # x2: double-buffered
    cap = max(8, min(512, (8 << 20) // bytes_per_row))
    divs = [hb for hb in range(8, min(cap, H) + 1, 8) if H % hb == 0]
    if not divs:
        return H          # tiny / odd-height images: one whole-H block
    deep = [hb for hb in divs if H // hb >= 4]
    return max(deep) if deep else max(divs)


def _make_resize_kernel(C, hb, W, th, tw_pad):
    """One grid step = one hb-row input window.
       width pass : (C*hb, W) @ (W, tw_pad)   bf16 -> f32  (lane-dense N)
       height pass: acc[c] += Wh_tile (th,hb) @ t[c]       f32 banded accumulation
    """

    def kernel(x_ref, wwt_ref, wh_ref, o_ref, acc_ref):
        k = pl.program_id(0)

        @pl.when(k == 0)
        def _init():
            acc_ref[...] = jnp.zeros_like(acc_ref)

        # Cast to f32 first so the (C,hb,W)->(C*hb,W) collapse is a free view
        # (hb is a multiple of the f32 sublane packing), then bf16 for the MXU.
        x2 = (x_ref[...].astype(jnp.float32)
              .reshape(C * hb, W)
              .astype(jnp.bfloat16))
        t = jnp.dot(x2, wwt_ref[...], preferred_element_type=jnp.float32)  # (C*hb, tw_pad) f32

        # f32 height weights + f32 intermediate (no bf16 re-rounding between
        # the passes).  C is tiny and static, so per-channel plain 2-D dots
        # replace the old broadcast_to + batched einsum.
        wh = wh_ref[0]                                                     # (th, hb) f32
        for c in range(C):
            acc_ref[c] += jnp.dot(wh, t[c * hb:(c + 1) * hb, :],
                                  preferred_element_type=jnp.float32)

        @pl.when(k == pl.num_programs(0) - 1)
        def _finalize():
            o_ref[...] = acc_ref[...].astype(o_ref.dtype)

    return kernel


def fixed_aspect_resize(image: jax.Array, target_size) -> jax.Array:
    """Pallas implementation of FixedAspectResize.forward for a CHW tensor."""
    C, H, W = image.shape
    th, tw = target_size
    aspect_ratio = th / tw                      # target_size[0] / target_size[1]
    img_aspect_ratio = H / W

    # --- exact replication of the module's padding arithmetic ---
    if img_aspect_ratio > aspect_ratio:
        new_w = int(W * aspect_ratio)
        pad_size = new_w - W
        pad_left = pad_size // 2
        pad_right = pad_size - pad_left
        pad_top, pad_bottom = 0, 0
    else:
        new_h = int(W / aspect_ratio)
        pad_size = new_h - H
        pad_top = pad_size // 2
        pad_bottom = pad_size - pad_top
        pad_left, pad_right = 0, 0
    # The module's arithmetic can go negative for non-square targets; the
    # torchvision Pad would raise, so guard explicitly.
    assert pad_size >= 0, f"negative pad_size={pad_size}: unsupported target/image combo"

    Hp = H + pad_top + pad_bottom
    Wp = W + pad_left + pad_right

    # Fold the zero padding into the resize matrices: build them over the
    # padded extents, keep only the columns hitting real pixels (zero-padded
    # pixels only ever multiply zero weights -> bit-identical, no jnp.pad pass).
    Wh_np = _bilinear_matrix(th, Hp)[:, pad_top:pad_top + H]       # (th, H)
    Ww_np = _bilinear_matrix(tw, Wp)[:, pad_left:pad_left + W]     # (tw, W)

    # Lane-dense output: pad the target width up to a multiple of 128 so the
    # output stores are unmasked and the MXU N dim is full; slice afterwards.
    tw_pad = ((tw + 127) // 128) * 128
    WwT_np = np.zeros((W, tw_pad), np.float32)
    WwT_np[:, :tw] = Ww_np.T

    # Input-row blocking for bounded VMEM and pipelined DMA.
    hb = _pick_row_block(H, C, W, image.dtype.itemsize)
    nb = H // hb

    # Pre-tile the height weights as (nb, th, hb) so each grid step gets its
    # banded slice via a plain Blocked index_map (standard, non-transposed dot).
    Wh_tiles_np = np.ascontiguousarray(
        Wh_np.reshape(th, nb, hb).transpose(1, 0, 2))               # (nb, th, hb)

    WwT = jnp.asarray(WwT_np, dtype=jnp.bfloat16)                   # MXU operand
    Wh_tiles = jnp.asarray(Wh_tiles_np, dtype=jnp.float32)          # f32 for parity

    in_itemsize = image.dtype.itemsize
    out_itemsize = in_itemsize
    est_vmem = (2 * C * hb * W * in_itemsize           # double-buffered input window
                + 2 * W * tw_pad * 2                   # WwT (bf16)
                + 2 * th * hb * 4                      # Wh tile (f32), double-buffered
                + C * th * tw_pad * 4                  # f32 accumulator scratch
                + 2 * C * th * tw_pad * out_itemsize   # resident output block
                + 2 * C * hb * tw_pad * 4)             # width-pass intermediate / spill headroom
    vmem_limit = int(min(64 << 20, max(8 << 20, 2 * est_vmem)))     # v7x-safe cap

    cost = pl.CostEstimate(
        flops=2 * C * H * tw_pad * (W + th),
        transcendentals=0,
        bytes_accessed=int(C * H * W * in_itemsize + WwT_np.size * 2
                           + Wh_tiles_np.size * 4 + C * th * tw_pad * out_itemsize),
    )

    kernel = _make_resize_kernel(C, hb, W, th, tw_pad)
    out = pl.pallas_call(
        kernel,
        out_shape=jax.ShapeDtypeStruct((C, th, tw_pad), image.dtype),
        grid=(nb,),
        in_specs=[
            pl.BlockSpec((C, hb, W), lambda k: (0, k, 0)),      # hb-row input window
            pl.BlockSpec((W, tw_pad), lambda k: (0, 0)),        # WwT, resident
            pl.BlockSpec((1, th, hb), lambda k: (k, 0, 0)),     # banded Wh tile
        ],
        out_specs=pl.BlockSpec((C, th, tw_pad), lambda k: (0, 0, 0)),
        scratch_shapes=[pltpu.VMEM((C, th, tw_pad), jnp.float32)],
        compiler_params=pltpu.CompilerParams(
            dimension_semantics=("arbitrary",),
            vmem_limit_bytes=vmem_limit),
        cost_estimate=cost,
    )(image, WwT, Wh_tiles)

    return out[:, :, :tw] if tw_pad != tw else out


def _reference(image, target_size):
    """Pure-JAX f32 reference: pad then separable bilinear resize."""
    C, H, W = image.shape
    th, tw = target_size
    aspect = th / tw
    if H / W > aspect:
        new_w = int(W * aspect)
        ps = new_w - W
        pl_, pr, pt, pb = ps // 2, ps - ps // 2, 0, 0
    else:
        new_h = int(W / aspect)
        ps = new_h - H
        pt, pb, pl_, pr = ps // 2, ps - ps // 2, 0, 0
    x = jnp.pad(image.astype(jnp.float32), ((0, 0), (pt, pb), (pl_, pr)))
    Wh = jnp.asarray(_bilinear_matrix(th, x.shape[1]))
    Ww = jnp.asarray(_bilinear_matrix(tw, x.shape[2]))
    return jnp.einsum("oh,chw,pw->cop", Wh, x, Ww)


if __name__ == "__main__":
    key = jax.random.PRNGKey(0)
    k1, k2, k3 = jax.random.split(key, 3)
    target_size = (16, 16)

    # Case 1: h/w < target aspect -> top/bottom-padding branch, 8x12 -> 16x16
    # upsample, RGB (odd channel count stays inside the block), single step.
    img1 = jax.random.bernoulli(k1, p=0.5, shape=(3, 8, 12)).astype(jnp.float32)
    out1 = jax.block_until_ready(fixed_aspect_resize(img1, target_size))
    ref1 = _reference(img1, target_size)
    assert out1.shape == (3, 16, 16), out1.shape
    assert jnp.allclose(out1, ref1, atol=1e-2, rtol=0), "case 1 mismatch vs reference"

    # Case 2: h/w > target aspect branch (pad happens to be 0), height
    # downsample, 4-step row-blocked accumulation (hb=8, nb=4).
    img2 = jax.random.bernoulli(k2, p=0.5, shape=(2, 32, 16)).astype(jnp.float32)
    out2 = jax.block_until_ready(fixed_aspect_resize(img2, target_size))
    ref2 = _reference(img2, target_size)
    assert out2.shape == (2, 16, 16), out2.shape
    assert jnp.allclose(out2, ref2, atol=1e-2, rtol=0), "case 2 mismatch vs reference"

    # Case 3: 128x128 target (lane-exact tw, no wrapper slice), top/bottom
    # padding, 5-step accumulation.
    img3 = jax.random.bernoulli(k3, p=0.5, shape=(3, 40, 48)).astype(jnp.float32)
    out3 = jax.block_until_ready(fixed_aspect_resize(img3, (128, 128)))
    ref3 = _reference(img3, (128, 128))
    assert out3.shape == (3, 128, 128), out3.shape
    assert jnp.allclose(out3, ref3, atol=1e-2, rtol=0), "case 3 mismatch vs reference"

    print("KERNEL_OK")
</pallas_src>

<mosaic_0001>
module attributes {stable_mosaic.version = 11 : i64} {
  func.func @kernel(%arg0: i32, %arg1: memref<3x8x12xf32, #tpu.memory_space<vmem>>, %arg2: memref<12x128xbf16, #tpu.memory_space<vmem>>, %arg3: memref<1x16x8xf32, #tpu.memory_space<vmem>>, %arg4: memref<3x16x128xf32, #tpu.memory_space<vmem>>, %arg5: memref<3x16x128xf32, #tpu.memory_space<vmem>>) attributes {dimension_semantics = [#tpu.dimension_semantics<arbitrary>], iteration_bounds = array<i64: 1>, scalar_prefetch = 0 : i64, scratch_operands = 1 : i64, tpu.core_type = #tpu.core_type<tc>, window_params = [{transform_indices = @transform_0, window_bounds = array<i64: 3, 8, 12>}, {pipeline_mode = #tpu.pipeline_mode<synchronous>, transform_indices = @transform_1, window_bounds = array<i64: 12, 128>}, {transform_indices = @transform_2, window_bounds = array<i64: 1, 16, 8>}, {pipeline_mode = #tpu.pipeline_mode<synchronous>, transform_indices = @transform_3, window_bounds = array<i64: 3, 16, 128>}]} {
    %c0_i32 = arith.constant 0 : i32
    %0 = arith.cmpi eq, %arg0, %c0_i32 : i32
    %1 = arith.extui %0 : i1 to i32
    %c0_i32_0 = arith.constant 0 : i32
    %2 = arith.cmpi ne, %1, %c0_i32_0 : i32
    scf.if %2 {
      %cst_29 = arith.constant 0.000000e+00 : f32
      %37 = vector.broadcast %cst_29 : f32 to vector<3x16x128xf32>
      %c0_30 = arith.constant 0 : index
      %c0_31 = arith.constant 0 : index
      %c0_32 = arith.constant 0 : index
      %38 = vector.load %arg5[%c0_30, %c0_31, %c0_32] : memref<3x16x128xf32, #tpu.memory_space<vmem>>, vector<3x16x128xf32>
      tpu.vector_store %arg5[%c0_30, %c0_31, %c0_32], %37 {strides = array<i32>} : memref<3x16x128xf32, #tpu.memory_space<vmem>>, vector<3x16x128xf32>,
    } else {
    }
    %c0 = arith.constant 0 : index
    %c0_1 = arith.constant 0 : index
    %c0_2 = arith.constant 0 : index
    %3 = vector.load %arg1[%c0, %c0_1, %c0_2] : memref<3x8x12xf32, #tpu.memory_space<vmem>>, vector<3x8x12xf32>
    %4 = vector.shape_cast %3 : vector<3x8x12xf32> to vector<24x12xf32>
    %5 = arith.truncf %4 : vector<24x12xf32> to vector<24x12xbf16>
    %c0_3 = arith.constant 0 : index
    %c0_4 = arith.constant 0 : index
    %6 = vector.load %arg2[%c0_3, %c0_4] : memref<12x128xbf16, #tpu.memory_space<vmem>>, vector<12x128xbf16>
    %cst = arith.constant dense<0.000000e+00> : vector<24x128xf32>
    %7 = tpu.matmul %5, %6, %cst {dimension_numbers = #tpu.dot_dimension_numbers<[1], [0], [0], [1], [0, 0, 1, 1], [], []>} : vector<24x12xbf16>, vector<12x128xbf16>, vector<24x128xf32> -> vector<24x128xf32>
    %c0_5 = arith.constant 0 : index
    %c0_6 = arith.constant 0 : index
    %c0_7 = arith.constant 0 : index
    %8 = vector.load %arg3[%c0_5, %c0_6, %c0_7] : memref<1x16x8xf32, #tpu.memory_space<vmem>>, vector<1x16x8xf32>
    %9 = vector.shape_cast %8 : vector<1x16x8xf32> to vector<16x8xf32>
    %c0_8 = arith.constant 0 : index
    %c0_9 = arith.constant 0 : index
    %c0_10 = arith.constant 0 : index
    %10 = vector.load %arg5[%c0_8, %c0_9, %c0_10] : memref<3x16x128xf32, #tpu.memory_space<vmem>>, vector<1x16x128xf32>
    %11 = vector.shape_cast %10 : vector<1x16x128xf32> to vector<16x128xf32>
    %12 = vector.extract_strided_slice %7 {offsets = [0, 0], sizes = [8, 128], strides = [1, 1]} : vector<24x128xf32> to vector<8x128xf32>
    %cst_11 = arith.constant dense<0.000000e+00> : vector<16x128xf32>
    %13 = tpu.matmul %9, %12, %cst_11 {dimension_numbers = #tpu.dot_dimension_numbers<[1], [0], [0], [1], [0, 0, 1, 1], [], []>} : vector<16x8xf32>, vector<8x128xf32>, vector<16x128xf32> -> vector<16x128xf32>
    %14 = arith.addf %11, %13 : vector<16x128xf32>
    %c0_12 = arith.constant 0 : index
    %c0_13 = arith.constant 0 : index
    %c0_14 = arith.constant 0 : index
    %15 = vector.load %arg5[%c0_12, %c0_13, %c0_14] : memref<3x16x128xf32, #tpu.memory_space<vmem>>, vector<1x16x128xf32>
    %16 = vector.shape_cast %15 : vector<1x16x128xf32> to vector<16x128xf32>
    %17 = vector.shape_cast %14 : vector<16x128xf32> to vector<1x16x128xf32>
    tpu.vector_store %arg5[%c0_12, %c0_13, %c0_14], %17 {strides = array<i32>} : memref<3x16x128xf32, #tpu.memory_space<vmem>>, vector<1x16x128xf32>,
    %c1 = arith.constant 1 : index
    %c0_15 = arith.constant 0 : index
    %c0_16 = arith.constant 0 : index
    %18 = vector.load %arg5[%c1, %c0_15, %c0_16] : memref<3x16x128xf32, #tpu.memory_space<vmem>>, vector<1x16x128xf32>
    %19 = vector.shape_cast %18 : vector<1x16x128xf32> to vector<16x128xf32>
    %20 = vector.extract_strided_slice %7 {offsets = [8, 0], sizes = [8, 128], strides = [1, 1]} : vector<24x128xf32> to vector<8x128xf32>
    %cst_17 = arith.constant dense<0.000000e+00> : vector<16x128xf32>
    %21 = tpu.matmul %9, %20, %cst_17 {dimension_numbers = #tpu.dot_dimension_numbers<[1], [0], [0], [1], [0, 0, 1, 1], [], []>} : vector<16x8xf32>, vector<8x128xf32>, vector<16x128xf32> -> vector<16x128xf32>
    %22 = arith.addf %19, %21 : vector<16x128xf32>
    %c1_18 = arith.constant 1 : index
    %c0_19 = arith.constant 0 : index
    %c0_20 = arith.constant 0 : index
    %23 = vector.load %arg5[%c1_18, %c0_19, %c0_20] : memref<3x16x128xf32, #tpu.memory_space<vmem>>, vector<1x16x128xf32>
    %24 = vector.shape_cast %23 : vector<1x16x128xf32> to vector<16x128xf32>
    %25 = vector.shape_cast %22 : vector<16x128xf32> to vector<1x16x128xf32>
    tpu.vector_store %arg5[%c1_18, %c0_19, %c0_20], %25 {strides = array<i32>} : memref<3x16x128xf32, #tpu.memory_space<vmem>>, vector<1x16x128xf32>,
    %c2 = arith.constant 2 : index
    %c0_21 = arith.constant 0 : index
    %c0_22 = arith.constant 0 : index
    %26 = vector.load %arg5[%c2, %c0_21, %c0_22] : memref<3x16x128xf32, #tpu.memory_space<vmem>>, vector<1x16x128xf32>
    %27 = vector.shape_cast %26 : vector<1x16x128xf32> to vector<16x128xf32>
    %28 = vector.extract_strided_slice %7 {offsets = [16, 0], sizes = [8, 128], strides = [1, 1]} : vector<24x128xf32> to vector<8x128xf32>
    %cst_23 = arith.constant dense<0.000000e+00> : vector<16x128xf32>
    %29 = tpu.matmul %9, %28, %cst_23 {dimension_numbers = #tpu.dot_dimension_numbers<[1], [0], [0], [1], [0, 0, 1, 1], [], []>} : vector<16x8xf32>, vector<8x128xf32>, vector<16x128xf32> -> vector<16x128xf32>
    %30 = arith.addf %27, %29 : vector<16x128xf32>
    %c2_24 = arith.constant 2 : index
    %c0_25 = arith.constant 0 : index
    %c0_26 = arith.constant 0 : index
    %31 = vector.load %arg5[%c2_24, %c0_25, %c0_26] : memref<3x16x128xf32, #tpu.memory_space<vmem>>, vector<1x16x128xf32>
    %32 = vector.shape_cast %31 : vector<1x16x128xf32> to vector<16x128xf32>
    %33 = vector.shape_cast %30 : vector<16x128xf32> to vector<1x16x128xf32>
    tpu.vector_store %arg5[%c2_24, %c0_25, %c0_26], %33 {strides = array<i32>} : memref<3x16x128xf32, #tpu.memory_space<vmem>>, vector<1x16x128xf32>,
    %c0_i32_27 = arith.constant 0 : i32
    %34 = arith.cmpi eq, %arg0, %c0_i32_27 : i32
    %35 = arith.extui %34 : i1 to i32
    %c0_i32_28 = arith.constant 0 : i32
    %36 = arith.cmpi ne, %35, %c0_i32_28 : i32
    scf.if %36 {
      %c0_29 = arith.constant 0 : index
      %c0_30 = arith.constant 0 : index
      %c0_31 = arith.constant 0 : index
      %37 = vector.load %arg5[%c0_29, %c0_30, %c0_31] : memref<3x16x128xf32, #tpu.memory_space<vmem>>, vector<3x16x128xf32>
      %c0_32 = arith.constant 0 : index
      %c0_33 = arith.constant 0 : index
      %c0_34 = arith.constant 0 : index
      %38 = vector.load %arg4[%c0_32, %c0_33, %c0_34] : memref<3x16x128xf32, #tpu.memory_space<vmem>>, vector<3x16x128xf32>
      tpu.vector_store %arg4[%c0_32, %c0_33, %c0_34], %37 {strides = array<i32>} : memref<3x16x128xf32, #tpu.memory_space<vmem>>, vector<3x16x128xf32>,
    } else {
    }
    return
  }
  func.func @transform_0(%arg0: i32) -> (i32, i32, i32) {
    %c0_i32 = arith.constant 0 : i32
    %c0_i32_0 = arith.constant 0 : i32
    %c0_i32_1 = arith.constant 0 : i32
    return %c0_i32, %arg0, %c0_i32_0 : i32, i32, i32
  }
  func.func @transform_1(%arg0: i32) -> (i32, i32) {
    %c0_i32 = arith.constant 0 : i32
    %c0_i32_0 = arith.constant 0 : i32
    %c0_i32_1 = arith.constant 0 : i32
    return %c0_i32, %c0_i32_0 : i32, i32
  }
  func.func @transform_2(%arg0: i32) -> (i32, i32, i32) {
    %c0_i32 = arith.constant 0 : i32
    %c0_i32_0 = arith.constant 0 : i32
    %c0_i32_1 = arith.constant 0 : i32
    return %arg0, %c0_i32, %c0_i32_0 : i32, i32, i32
  }
  func.func @transform_3(%arg0: i32) -> (i32, i32, i32) {
    %c0_i32 = arith.constant 0 : i32
    %c0_i32_0 = arith.constant 0 : i32
    %c0_i32_1 = arith.constant 0 : i32
    %c0_i32_2 = arith.constant 0 : i32
    return %c0_i32, %c0_i32_0, %c0_i32_1 : i32, i32, i32
  }
}

</mosaic_0001>

<llo_original>
// kernel: tpu_custom_call.1
$region0: #{tpu_custom_call.1}
  #allocation0 [shape = 'u32[]', space=smem, size = 0x4, offset = 0x4, fixed_abs, tag = 'smem constant byte address 0x4 - core index']
  #allocation1 [shape = 'u32[72,128]{1,0:T(1,128)}', space=vmem, size = 0x9000, scoped, tag = 'internal scratch']
  #allocation2 [shape = 'f32[3,16,128]{2,1,0:T(8,128)}', space=vmem, size = 0x6000, scoped, tag = 'scratch operand']
  %s0 = inlined_call_operand.vmem [shape: f32[3,8,12], index: 0, kind: input, shape index: {}]
  %s1 = inlined_call_operand.hbm [shape: bf16[12,128], index: 1, kind: input, shape index: {}]
  %s2 = inlined_call_operand.vmem [shape: f32[1,16,8], index: 2, kind: input, shape index: {}]
  %s3 = inlined_call_operand.hbm [shape: f32[3,16,128], index: 3, kind: output, shape index: {}]
  %s4 = sld [smem:[#allocation0]]
  $region34: #{tpu_custom_call.1} parent=0
    _
  %s6 = ssub.s32 1, %s4
  %s7 = scalar_select 0, %s6, %s4
  $region1: #{tpu_custom_call.1} parent=0
    #allocation3 [shape = 'u8[4096]{0}', space=vmem, size = 0x1000, scoped, tag = 'input window, operand 1, single buffered']
    #allocation4 [shape = 's32[1]{0}', space=sflag, size = 0x4, scoped, tag = 'scoped memory for tpu_custom_call.1']
    #allocation5 [shape = 's32[1]{0}', space=sflag, size = 0x4, scoped, tag = 'scoped memory for tpu_custom_call.1']
    #allocation6 [shape = 'u8[24576]{0}', space=vmem, size = 0x6000, scoped, tag = 'output window, operand 0, single buffered']
    %8 = vsyncpa [#allocation4], 0
    %9 = vsyncpa [#allocation5], 0
    // Predicated region
    $region2: #{tpu_custom_call.1} parent=1 // pred_check
      _
    $region3: #{tpu_custom_call.1} parent=1 // pred_check_branch
      %11 = sbr.rel (0) target = $region5
    $region4: #{tpu_custom_call.1} parent=1 // pred_region
      _
    $region5: #{tpu_custom_call.1} parent=1 // pred_fallthru
      _
    // Predicated region
    $region6: #{tpu_custom_call.1} parent=1 // pred_check
      _
    $region7: #{tpu_custom_call.1} parent=1 // pred_check_branch
      %13 = sbr.rel (0) target = $region9
    $region8: #{tpu_custom_call.1} parent=1 // pred_region
      %15 = vsyncadd [#allocation4], 0
      %s16 = sshll.u32 %s1, 4
      %s17 = int_to_ptr.hbm [resolvable:$true] %s16
      %s18 = sshll.u32 [#allocation3], 4
      %s19 = int_to_ptr.vmem [resolvable:$true] %s18
      %24 = dma.hbm_to_vmem [thread:$0]  %s17, 128, %s19, [#allocation4], 64, 64, 4
    $region9: #{tpu_custom_call.1} parent=1 // pred_fallthru
      _
    // Predicated region
    $region10: #{tpu_custom_call.1} parent=1 // pred_check
      _
    $region11: #{tpu_custom_call.1} parent=1 // pred_check_branch
      %26 = sbr.rel (0) target = $region13
    $region12: #{tpu_custom_call.1} parent=1 // pred_region
      _
    $region13: #{tpu_custom_call.1} parent=1 // pred_fallthru
      _
    // Predicated region
    $region14: #{tpu_custom_call.1} parent=1 // pred_check
      _
    $region15: #{tpu_custom_call.1} parent=1 // pred_check_branch
      %28 = sbr.rel (0) target = $region17
    $region16: #{tpu_custom_call.1} parent=1 // pred_region
      %30 = dma.done [#allocation4], 128
    $region17: #{tpu_custom_call.1} parent=1 // pred_fallthru
      _
    %p32 = scmp.eq.s32.totalorder 0, 0
    // Predicated region
    $region18: #{tpu_custom_call.1} parent=1 // pred_check
      %p33 = pneg %p32
    $region19: #{tpu_custom_call.1} parent=1 // pred_check_branch
      %35 = sbr.rel (%p33) target = $region21
    $region20: #{tpu_custom_call.1} parent=1 // pred_region
      %36 = vst [vmem:[#allocation2] sm:$0xff] 0.0
      %37 = vst [vmem:[#allocation2 + $0x8] sm:$0xff] 0.0
      %38 = vst [vmem:[#allocation2 + $0x10] sm:$0xff] 0.0
      %39 = vst [vmem:[#allocation2 + $0x18] sm:$0xff] 0.0
      %40 = vst [vmem:[#allocation2 + $0x20] sm:$0xff] 0.0
      %41 = vst [vmem:[#allocation2 + $0x28] sm:$0xff] 0.0
    $region21: #{tpu_custom_call.1} parent=1 // pred_fallthru
      _
    %v42 = vld [vmem:[%s0] sm:$0xff]
    %v43 = vld [vmem:[%s0 + $0x8] sm:$0xff]
    %v44 = vld [vmem:[%s0 + $0x10] sm:$0xff]
    %v45 = vpack.c.bf16 %v43, %v42
    %v46 = vpack.c.bf16 %v44, %v44
    %v47 = vld [vmem:[#allocation3] sm:$0xf]
    %v48 = vld [vmem:[#allocation3 + $0x4] sm:$0x3]
    %v51 = vunpack.c.l.b16 %v47
    %v52 = vunpack.c.l.b16 %v48
    %v53 = vpack.c.b16 %v52, %v51
    %vm54 = vcmask 97280
    %v56 = vsel %vm54, %v45, 0
    %v59 = vsel %vm54, %v46, 0
    %vm61 = vcmask 1045504
    %v63 = vsel %vm61, %v53, 0
    %65 = vmatpush.bf16.msra.mxu0 0
    %66 = vmatpush.bf16.msra.mxu0 0
    %67 = vmatpush.bf16.msra.mxu0 0
    %68 = vmatpush.bf16.msra.mxu0 0
    %69 = vmatpush.bf16.msra.mxu0 0
    %70 = vmatpush.bf16.msra.mxu0 0
    %71 = vmatpush.bf16.msra.mxu0 0
    %72 = vmatpush.bf16.msra.mxu0 %v63
    %73 = vmatmul.bf16.gmra.mxu0 %v56
    %v74 = vpop.f32.mrf.mxu0
    %v75 = vadd.f32 0.0, %v74
    %v76 = vpop.f32.mrf.mxu0
    %v77 = vadd.f32 0.0, %v76
    %78 = vmatmul.bf16.gmra.mxu0 %v59
    %v79 = vpop.f32.mrf.mxu0
    %v80 = vadd.f32 0.0, %v79
    %v81 = vpop.f32.mrf.mxu0
    %82 = vdwg.mxu0
    %v83 = vld [vmem:[%s2] sm:$0xff]
    %v84 = vld [vmem:[%s2 + $0x8] sm:$0xff]
    %v85 = vld [vmem:[#allocation2] sm:$0xff]
    %v86 = vld [vmem:[#allocation2 + $0x8] sm:$0xff]
    %vm87 = vcmask 64512
    %v89 = vsel %vm87, %v83, 0
    %v92 = vsel %vm87, %v84, 0
    %94 = vmatpush.msra.mxu0 0.0
    %95 = vmatpush.msra.mxu0 0.0
    %96 = vmatpush.msra.mxu0 0.0
    %97 = vmatpush.msra.mxu0 0.0
    %98 = vmatpush.msra.mxu0 0.0
    %99 = vmatpush.msra.mxu0 0.0
    %100 = vmatpush.msra.mxu0 0.0
    %101 = vmatpush.msra.mxu0 0.0
    %102 = vmatpush.msra.mxu0 0.0
    %103 = vmatpush.msra.mxu0 0.0
    %104 = vmatpush.msra.mxu0 0.0
    %105 = vmatpush.msra.mxu0 0.0
    %106 = vmatpush.msra.mxu0 0.0
    %107 = vmatpush.msra.mxu0 0.0
    %108 = vmatpush.msra.mxu0 0.0
    %109 = vmatpush.msra.mxu0 %v75
    %110 = vmatmul.f32.gmra.mxu0 %v89
    %v111 = vpop.f32.mrf.mxu0
    %v112 = vadd.f32 0.0, %v111
    %113 = vmatmul.f32.gmra.mxu0 %v92
    %v114 = vpop.f32.mrf.mxu0
    %v115 = vadd.f32 0.0, %v114
    %116 = vdwg.mxu0
    %v117 = vadd.f32 %v85, %v112
    %v118 = vadd.f32 %v86, %v115
    %119 = vst [vmem:[#allocation2] sm:$0xff] %v117
    %120 = vst [vmem:[#allocation2 + $0x8] sm:$0xff] %v118
    %s121 = scalar_lea.vmem [#allocation2], 16
    %v122 = vld [vmem:[%s121] sm:$0xff]
    %v123 = vld [vmem:[%s121 + $0x8] sm:$0xff]
    %124 = vmatpush.msra.mxu0 0.0
    %125 = vmatpush.msra.mxu0 0.0
    %126 = vmatpush.msra.mxu0 0.0
    %127 = vmatpush.msra.mxu0 0.0
    %128 = vmatpush.msra.mxu0 0.0
    %129 = vmatpush.msra.mxu0 0.0
    %130 = vmatpush.msra.mxu0 0.0
    %131 = vmatpush.msra.mxu0 0.0
    %132 = vmatpush.msra.mxu0 0.0
    %133 = vmatpush.msra.mxu0 0.0
    %134 = vmatpush.msra.mxu0 0.0
    %135 = vmatpush.msra.mxu0 0.0
    %136 = vmatpush.msra.mxu0 0.0
    %137 = vmatpush.msra.mxu0 0.0
    %138 = vmatpush.msra.mxu0 0.0
    %139 = vmatpush.msra.mxu0 %v77
    %140 = vmatmul.f32.gmra.mxu0 %v89
    %v141 = vpop.f32.mrf.mxu0
    %v142 = vadd.f32 0.0, %v141
    %143 = vmatmul.f32.gmra.mxu0 %v92
    %v144 = vpop.f32.mrf.mxu0
    %v145 = vadd.f32 0.0, %v144
    %146 = vdwg.mxu0
    %v147 = vadd.f32 %v122, %v142
    %v148 = vadd.f32 %v123, %v145
    %149 = vst [vmem:[%s121] sm:$0xff] %v147
    %150 = vst [vmem:[%s121 + $0x8] sm:$0xff] %v148
    %s151 = scalar_lea.vmem [#allocation2], 32
    %v152 = vld [vmem:[%s151] sm:$0xff]
    %v153 = vld [vmem:[%s151 + $0x8] sm:$0xff]
    %154 = vmatpush.msra.mxu0 0.0
    %155 = vmatpush.msra.mxu0 0.0
    %156 = vmatpush.msra.mxu0 0.0
    %157 = vmatpush.msra.mxu0 0.0
    %158 = vmatpush.msra.mxu0 0.0
    %159 = vmatpush.msra.mxu0 0.0
    %160 = vmatpush.msra.mxu0 0.0
    %161 = vmatpush.msra.mxu0 0.0
    %162 = vmatpush.msra.mxu0 0.0
    %163 = vmatpush.msra.mxu0 0.0
    %164 = vmatpush.msra.mxu0 0.0
    %165 = vmatpush.msra.mxu0 0.0
    %166 = vmatpush.msra.mxu0 0.0
    %167 = vmatpush.msra.mxu0 0.0
    %168 = vmatpush.msra.mxu0 0.0
    %169 = vmatpush.msra.mxu0 %v80
    %170 = vmatmul.f32.gmra.mxu0 %v89
    %v171 = vpop.f32.mrf.mxu0
    %v172 = vadd.f32 0.0, %v171
    %173 = vmatmul.f32.gmra.mxu0 %v92
    %v174 = vpop.f32.mrf.mxu0
    %v175 = vadd.f32 0.0, %v174
    %176 = vdwg.mxu0
    %v177 = vadd.f32 %v152, %v172
    %v178 = vadd.f32 %v153, %v175
    %179 = vst [vmem:[%s151] sm:$0xff] %v177
    %180 = vst [vmem:[%s151 + $0x8] sm:$0xff] %v178
    // Predicated region
    $region22: #{tpu_custom_call.1} parent=1 // pred_check
      %p181 = pneg %p32
    $region23: #{tpu_custom_call.1} parent=1 // pred_check_branch
      %183 = sbr.rel (%p181) target = $region25
    $region24: #{tpu_custom_call.1} parent=1 // pred_region
      %v184 = vld [vmem:[#allocation2] sm:$0xff]
      %v185 = vld [vmem:[#allocation2 + $0x8] sm:$0xff]
      %v186 = vld [vmem:[#allocation2 + $0x10] sm:$0xff]
      %v187 = vld [vmem:[#allocation2 + $0x18] sm:$0xff]
      %v188 = vld [vmem:[#allocation2 + $0x20] sm:$0xff]
      %v189 = vld [vmem:[#allocation2 + $0x28] sm:$0xff]
      %190 = vst [vmem:[#allocation6] sm:$0xff] %v184
      %191 = vst [vmem:[#allocation6 + $0x8] sm:$0xff] %v185
      %192 = vst [vmem:[#allocation6 + $0x10] sm:$0xff] %v186
      %193 = vst [vmem:[#allocation6 + $0x18] sm:$0xff] %v187
      %194 = vst [vmem:[#allocation6 + $0x20] sm:$0xff] %v188
      %195 = vst [vmem:[#allocation6 + $0x28] sm:$0xff] %v189
    $region25: #{tpu_custom_call.1} parent=1 // pred_fallthru
      _
    // Predicated region
    $region26: #{tpu_custom_call.1} parent=1 // pred_check
      _
    $region27: #{tpu_custom_call.1} parent=1 // pred_check_branch
      %197 = sbr.rel (0) target = $region29
    $region28: #{tpu_custom_call.1} parent=1 // pred_region
      %199 = vsyncadd [#allocation5], 0
      %s200 = sshll.u32 [#allocation6], 4
      %s201 = int_to_ptr.vmem [resolvable:$true] %s200
      %s202 = sshll.u32 %s3, 4
      %s203 = int_to_ptr.hbm [resolvable:$true] %s202
      %208 = dma.vmem_to_hbm [thread:$0]  %s201, 768, %s203, [#allocation5], 128, 128, 8
    $region29: #{tpu_custom_call.1} parent=1 // pred_fallthru
      _
    // Predicated region
    $region30: #{tpu_custom_call.1} parent=1 // pred_check
      _
    $region31: #{tpu_custom_call.1} parent=1 // pred_check_branch
      %210 = sbr.rel (0) target = $region33
    $region32: #{tpu_custom_call.1} parent=1 // pred_region
      %212 = dma.done [#allocation5], 768
    $region33: #{tpu_custom_call.1} parent=1 // pred_fallthru
      _
    %213 = vsyncpa [#allocation4], 1
    %214 = vsyncpa [#allocation5], 1

</llo_original>
